<compile_context>
chip_gen: v6e
topology: v6e:2x2x1
jax: 0.10.0
libtpu: 0.0.40
codegen_flags: <defaults>
</compile_context>

<pallas_src>
import math

import numpy as np

import jax
import jax.numpy as jnp
from jax.experimental import pallas as pl
from jax.experimental.pallas import tpu as pltpu

_LANES = 128


def base_model_kernel(x_ref, o_ref):
    # Hot path: elementwise pass-through of the current VMEM tile.
    # Subclass-specific math would replace / extend this line.
    o_ref[...] = x_ref[...]


def _sublane_min(itemsize: int) -> int:
    """Minimum sublane extent matching the dtype's native (8,128) packing."""
    if itemsize >= 4:
        return 8
    if itemsize == 2:
        return 16
    return 32


def _tile_cap_bytes() -> int:
    """Per-buffer VMEM tile cap, keyed on TPU generation."""
    try:
        kind = jax.devices()[0].device_kind.lower()
    except Exception:  # pragma: no cover - defensive
        kind = ""
    if "v7" in kind:
        return 6 << 20   # faster HBM -> larger tiles amortize per-step overhead
    if "v6" in kind:
        return 4 << 20
    return 2 << 20       # v5e and older / unknown: stay well inside scoped VMEM


def _choose_layout(total: int, itemsize: int):
    """Lane-dense 2-D view (rows, cols) and a row tile for the streaming copy.

    cols is a multiple of 128 (512 when the array is big enough) so stores are
    unmasked full-lane `vst`s.  The flat buffer is padded up to rows*cols by
    the caller when total is not a multiple of cols.
    """
    sub = _sublane_min(itemsize)
    cols = 512 if total >= 512 else _LANES
    rows = -(-total // cols)          # cdiv; flat buffer padded to rows*cols

    if rows <= sub:
        # Single full-array block (block dims equal to array dims is allowed
        # even when not (8,128)-divisible).
        return rows, cols, rows

    cap = _tile_cap_bytes()
    cap_rows = max(sub, (cap // (cols * itemsize)) // sub * sub)
    row_tile = min(cap_rows, (rows // sub) * sub)   # multiple of sub, <= rows
    row_tile = max(row_tile, sub)
    return rows, cols, row_tile


def _forward_impl(x: jax.Array) -> jax.Array:
    """Identity forward of the abstract base Model, run through Pallas."""
    orig_shape = x.shape
    total = int(math.prod(orig_shape)) if orig_shape else 1
    itemsize = jnp.dtype(x.dtype).itemsize

    rows, cols, row_tile = _choose_layout(total, itemsize)
    padded_total = rows * cols

    # Row-major flatten of the contiguous buffer -> bitcast view under jit.
    x_flat = x.reshape(-1)
    if padded_total != total:
        # Pad to a lane-multiple slab so every store is an unmasked full-lane
        # `vst` and the copy stays pipelined (one extra write of the pad tail).
        x_flat = jnp.pad(x_flat, (0, padded_total - total))
    x2d = x_flat.reshape(rows, cols)

    grid = ((rows + row_tile - 1) // row_tile,)   # partial last block is OK
    tile_bytes = row_tile * cols * itemsize
    # Cover 2 in + 2 out double buffers with headroom; <= 48 MiB keeps us
    # safely inside v7x's 64 MiB physical VMEM (128 MiB on v5e/v6e).
    vmem_limit = int(min(48 << 20, max(32 << 20, 4 * tile_bytes + (4 << 20))))

    out2d = pl.pallas_call(
        base_model_kernel,
        out_shape=jax.ShapeDtypeStruct((rows, cols), x2d.dtype),
        grid=grid,
        in_specs=[pl.BlockSpec((row_tile, cols), lambda i: (i, 0))],
        out_specs=pl.BlockSpec((row_tile, cols), lambda i: (i, 0)),
        input_output_aliases={0: 0},
        compiler_params=pltpu.CompilerParams(
            dimension_semantics=("parallel",),
            vmem_limit_bytes=vmem_limit,
        ),
        cost_estimate=pl.CostEstimate(
            flops=0,
            transcendentals=0,
            bytes_accessed=2 * padded_total * itemsize,
        ),
    )(x2d)

    out_flat = out2d.reshape(-1)
    if padded_total != total:
        out_flat = out_flat[:total]
    return out_flat.reshape(orig_shape)


# Donate the input so input_output_aliases={0: 0} actually aliases the HBM
# buffer instead of forcing a defensive copy before the custom call.
base_model_forward = jax.jit(_forward_impl, donate_argnums=(0,))


if __name__ == "__main__":
    key = jax.random.PRNGKey(0)
    # Small NCHW input consistent with a generic vision-style Model.
    x = jax.random.normal(key, (2, 4, 16, 16), dtype=jnp.float32)

    # Save a host-side reference BEFORE the call: x is donated (its device
    # buffer is invalidated once base_model_forward consumes it).
    x_ref = np.asarray(x)

    y = base_model_forward(x)
    jax.block_until_ready(y)

    # Identity semantics check (the only defined behavior of the base class).
    assert y.shape == x_ref.shape
    assert y.dtype == jnp.float32
    assert np.allclose(np.asarray(y), x_ref), "Pallas identity kernel mismatch"

    print("KERNEL_OK")
</pallas_src>

<mosaic_0001>
module attributes {stable_mosaic.version = 11 : i64} {
  func.func @base_model_kernel(%arg0: i32, %arg1: memref<4x512xf32, #tpu.memory_space<vmem>>, %arg2: memref<4x512xf32, #tpu.memory_space<vmem>>) attributes {dimension_semantics = [#tpu.dimension_semantics<parallel>], iteration_bounds = array<i64: 1>, scalar_prefetch = 0 : i64, scratch_operands = 0 : i64, tpu.core_type = #tpu.core_type<tc>, window_params = [{transform_indices = @transform_0, window_bounds = array<i64: 4, 512>}, {transform_indices = @transform_1, window_bounds = array<i64: 4, 512>}]} {
    %c0 = arith.constant 0 : index
    %c0_0 = arith.constant 0 : index
    %0 = vector.load %arg1[%c0, %c0_0] : memref<4x512xf32, #tpu.memory_space<vmem>>, vector<4x512xf32>
    %c0_1 = arith.constant 0 : index
    %c0_2 = arith.constant 0 : index
    %1 = vector.load %arg2[%c0_1, %c0_2] : memref<4x512xf32, #tpu.memory_space<vmem>>, vector<4x512xf32>
    tpu.vector_store %arg2[%c0_1, %c0_2], %0 {strides = array<i32>} : memref<4x512xf32, #tpu.memory_space<vmem>>, vector<4x512xf32>,
    return
  }
  func.func @transform_0(%arg0: i32) -> (i32, i32) {
    %c0_i32 = arith.constant 0 : i32
    %c0_i32_0 = arith.constant 0 : i32
    return %arg0, %c0_i32 : i32, i32
  }
  func.func @transform_1(%arg0: i32) -> (i32, i32) {
    %c0_i32 = arith.constant 0 : i32
    %c0_i32_0 = arith.constant 0 : i32
    return %arg0, %c0_i32 : i32, i32
  }
}

</mosaic_0001>

<llo_original>
// kernel: _forward_impl.1
$region0: #{_forward_impl.1}
  #allocation0 [shape = 'u32[]', space=smem, size = 0x4, offset = 0x4, fixed_abs, tag = 'smem constant byte address 0x4 - core index']
  #allocation1 [shape = 'u32[144,128]{1,0:T(1,128)}', space=vmem, size = 0x12000, scoped, tag = 'internal scratch']
  %s0 = inlined_call_operand.vmem [shape: f32[4,512], index: 0, kind: input, shape index: {}, may-alias: {0,1}]
  %s1 = inlined_call_operand.vmem [shape: f32[4,512], index: 1, kind: output, shape index: {}, may-alias: {0,1}]
  %s2 = sld [smem:[#allocation0]]
  $region14: #{_forward_impl.1} parent=0
    _
  %s4 = ssub.s32 1, %s2
  %s5 = scalar_select 0, %s4, %s2
  // Predicated region
  $region2: #{_forward_impl.1} parent=0 // pred_check
    _
  $region3: #{_forward_impl.1} parent=0 // pred_check_branch
    %7 = sbr.rel (0) target = $region5
  $region4: #{_forward_impl.1} parent=0 // pred_region
    _
  $region5: #{_forward_impl.1} parent=0 // pred_fallthru
    _
  %v8 = vld [vmem:[%s0] sm:$0xff]
  %v9 = vld [vmem:[%s0 + $0x8] sm:$0xff]
  %10 = vst [vmem:[%s1] sm:$0xff] %v8
  %11 = vst [vmem:[%s1 + $0x8] sm:$0xff] %v9
  // Predicated region
  $region6: #{_forward_impl.1} parent=0 // pred_check
    _
  $region7: #{_forward_impl.1} parent=0 // pred_check_branch
    %13 = sbr.rel (0) target = $region9
  $region8: #{_forward_impl.1} parent=0 // pred_region
    _
  $region9: #{_forward_impl.1} parent=0 // pred_fallthru
    _
  // Predicated region
  $region10: #{_forward_impl.1} parent=0 // pred_check
    _
  $region11: #{_forward_impl.1} parent=0 // pred_check_branch
    %15 = sbr.rel (0) target = $region13
  $region12: #{_forward_impl.1} parent=0 // pred_region
    _
  $region13: #{_forward_impl.1} parent=0 // pred_fallthru
    _

</llo_original>
